<compile_context>
chip_gen: v7x
topology: tpu7x:2x2x1
jax: 0.10.0
libtpu: 0.0.40
codegen_flags: <defaults>
</compile_context>

<pallas_src>
import functools
import math

import jax
import jax.numpy as jnp
from jax.experimental import pallas as pl
from jax.experimental.pallas import tpu as pltpu

_VMEM_LIMIT = 32 * 1024 * 1024  # explicit scoped-VMEM budget (safe on v5e/v6e/v7x)


# ----------------------------- helpers -----------------------------

def _round_up(x, m):
    return ((x + m - 1) // m) * m


def _tile_rows(M):
    if M >= 256:
        return 256
    if M >= 128:
        return 128
    return _round_up(M, 8)


# ----------------------------- tiled linear (bf16 MXU, f32 acc) -----------------------------

def _matmul_kernel(x_ref, w_ref, b_ref, o_ref, acc_ref, *, n_k):
    k = pl.program_id(2)

    @pl.when(k == 0)
    def _():
        acc_ref[...] = jnp.zeros_like(acc_ref)

    acc_ref[...] += jnp.dot(x_ref[...], w_ref[...],
                            preferred_element_type=jnp.float32)

    @pl.when(k == n_k - 1)
    def _():
        o_ref[...] = (acc_ref[...] + b_ref[...]).astype(o_ref.dtype)


def pallas_linear(x, w, b):
    """x: (M, K) bf16, w: (K, N) bf16, b: (N,) f32 -> (M, N) bf16."""
    M, K = x.shape
    N = w.shape[1]

    TM = _tile_rows(M)
    Mp = _round_up(M, TM)
    if N >= 128:
        TN = 256 if N >= 256 else 128
        Np = _round_up(N, TN)
    else:
        TN, Np = N, N
    if K >= 128:
        TK = 512 if K >= 512 else _round_up(K, 128)
        Kp = _round_up(K, TK)
    else:
        TK = _round_up(K, 8)
        Kp = TK
    n_k = Kp // TK

    xp = jnp.pad(x, ((0, Mp - M), (0, Kp - K))) if (Mp != M or Kp != K) else x
    wp = jnp.pad(w, ((0, Kp - K), (0, Np - N))) if (Kp != K or Np != N) else w
    bp = b.reshape(1, N)
    if Np != N:
        bp = jnp.pad(bp, ((0, 0), (0, Np - N)))

    out = pl.pallas_call(
        functools.partial(_matmul_kernel, n_k=n_k),
        out_shape=jax.ShapeDtypeStruct((Mp, Np), jnp.bfloat16),
        grid=(Mp // TM, Np // TN, n_k),
        in_specs=[
            pl.BlockSpec((TM, TK), lambda i, j, k: (i, k)),
            pl.BlockSpec((TK, TN), lambda i, j, k: (k, j)),
            pl.BlockSpec((1, TN), lambda i, j, k: (0, j)),
        ],
        out_specs=pl.BlockSpec((TM, TN), lambda i, j, k: (i, j)),
        scratch_shapes=[pltpu.VMEM((TM, TN), jnp.float32)],
        compiler_params=pltpu.CompilerParams(
            dimension_semantics=("parallel", "parallel", "arbitrary"),
            vmem_limit_bytes=_VMEM_LIMIT),
    )(xp, wp, bp)
    return out[:M, :N]


# ----------------------------- fused LayerNorm + linear (LN cached in scratch) -----------------------------

def _ln_matmul_kernel(x_ref, g_ref, be_ref, w_ref, b_ref, o_ref, ln_sc):
    @pl.when(pl.program_id(1) == 0)
    def _():
        x = x_ref[...].astype(jnp.float32)
        mean = jnp.mean(x, axis=-1, keepdims=True)
        var = jnp.mean((x - mean) ** 2, axis=-1, keepdims=True)
        ln = (x - mean) * jax.lax.rsqrt(var + 1e-6) * g_ref[...] + be_ref[...]
        ln_sc[...] = ln.astype(jnp.bfloat16)

    o_ref[...] = (jnp.dot(ln_sc[...], w_ref[...],
                          preferred_element_type=jnp.float32)
                  + b_ref[...]).astype(o_ref.dtype)


def pallas_ln_linear(x, g, be, w, b):
    """LayerNorm(x) @ w + b.  x: (M, K) bf16, g/be: (1, K) f32, w: (K, N) bf16 -> bf16."""
    M, K = x.shape
    N = w.shape[1]
    TM = _tile_rows(M)
    Mp = _round_up(M, TM)
    if N >= 128:
        TN = 256 if N >= 256 else 128
        Np = _round_up(N, TN)
    else:
        TN, Np = N, N

    xp = jnp.pad(x, ((0, Mp - M), (0, 0))) if Mp != M else x
    wp = jnp.pad(w, ((0, 0), (0, Np - N))) if Np != N else w
    bp = b.reshape(1, N)
    if Np != N:
        bp = jnp.pad(bp, ((0, 0), (0, Np - N)))

    out = pl.pallas_call(
        _ln_matmul_kernel,
        out_shape=jax.ShapeDtypeStruct((Mp, Np), jnp.bfloat16),
        grid=(Mp // TM, Np // TN),
        in_specs=[
            pl.BlockSpec((TM, K), lambda i, j: (i, 0)),
            pl.BlockSpec((1, K), lambda i, j: (0, 0)),
            pl.BlockSpec((1, K), lambda i, j: (0, 0)),
            pl.BlockSpec((K, TN), lambda i, j: (0, j)),
            pl.BlockSpec((1, TN), lambda i, j: (0, j)),
        ],
        out_specs=pl.BlockSpec((TM, TN), lambda i, j: (i, j)),
        scratch_shapes=[pltpu.VMEM((TM, K), jnp.bfloat16)],
        compiler_params=pltpu.CompilerParams(
            dimension_semantics=("parallel", "arbitrary"),
            vmem_limit_bytes=_VMEM_LIMIT),
    )(xp, g, be, wp, bp)
    return out[:M, :N]


# ----------------------------- row-gridded LayerNorm -----------------------------

def _layernorm_kernel(x_ref, g_ref, b_ref, o_ref):
    x = x_ref[...].astype(jnp.float32)
    mean = jnp.mean(x, axis=-1, keepdims=True)
    var = jnp.mean((x - mean) ** 2, axis=-1, keepdims=True)
    o_ref[...] = ((x - mean) * jax.lax.rsqrt(var + 1e-6) * g_ref[...]
                  + b_ref[...]).astype(o_ref.dtype)


def pallas_layer_norm(x, g, b):
    """x: (B, L, D) bf16; g, b: (1, D) f32 -> (B, L, D) bf16."""
    B, L, D = x.shape
    M = B * L
    TM = _tile_rows(M)
    Mp = _round_up(M, TM)
    x2 = x.reshape(M, D)
    if Mp != M:
        x2 = jnp.pad(x2, ((0, Mp - M), (0, 0)))
    y = pl.pallas_call(
        _layernorm_kernel,
        out_shape=jax.ShapeDtypeStruct((Mp, D), jnp.bfloat16),
        grid=(Mp // TM,),
        in_specs=[
            pl.BlockSpec((TM, D), lambda i: (i, 0)),
            pl.BlockSpec((1, D), lambda i: (0, 0)),
            pl.BlockSpec((1, D), lambda i: (0, 0)),
        ],
        out_specs=pl.BlockSpec((TM, D), lambda i: (i, 0)),
        compiler_params=pltpu.CompilerParams(
            dimension_semantics=("parallel",),
            vmem_limit_bytes=_VMEM_LIMIT),
    )(x2, g, b)
    return y[:M].reshape(B, L, D)


# ----------------------------- fused FFN (LN -> W1 -> ReLU -> W2 + residual), d_ff tiled -----------------------------

def _ffn_kernel(x_ref, g_ref, be_ref, w1_ref, b1_ref, w2_ref, b2_ref, o_ref,
                ln_sc, acc_sc, *, n_f):
    fi = pl.program_id(1)

    @pl.when(fi == 0)
    def _():
        x = x_ref[...].astype(jnp.float32)
        mean = jnp.mean(x, axis=-1, keepdims=True)
        var = jnp.mean((x - mean) ** 2, axis=-1, keepdims=True)
        ln = (x - mean) * jax.lax.rsqrt(var + 1e-6) * g_ref[...] + be_ref[...]
        ln_sc[...] = ln.astype(jnp.bfloat16)
        acc_sc[...] = jnp.zeros_like(acc_sc)

    h = jnp.maximum(
        jnp.dot(ln_sc[...], w1_ref[...],
                preferred_element_type=jnp.float32) + b1_ref[...], 0.0)
    acc_sc[...] += jnp.dot(h.astype(jnp.bfloat16), w2_ref[...],
                           preferred_element_type=jnp.float32)

    @pl.when(fi == n_f - 1)
    def _():
        o_ref[...] = (acc_sc[...] + b2_ref[...]
                      + x_ref[...].astype(jnp.float32)).astype(o_ref.dtype)


def ffn_block(x, p):
    """Fused PositionwiseFeedForward: w2(relu(w1(LN(x)))) + x, grid over (rows, d_ff tiles)."""
    B, L, D = x.shape
    M = B * L
    F = p["w1"].shape[1]
    TM = _tile_rows(M)
    Mp = _round_up(M, TM)
    TF = 512 if (F >= 512 and F % 512 == 0) else F
    n_f = F // TF

    x2 = x.reshape(M, D)
    if Mp != M:
        x2 = jnp.pad(x2, ((0, Mp - M), (0, 0)))

    y = pl.pallas_call(
        functools.partial(_ffn_kernel, n_f=n_f),
        out_shape=jax.ShapeDtypeStruct((Mp, D), jnp.bfloat16),
        grid=(Mp // TM, n_f),
        in_specs=[
            pl.BlockSpec((TM, D), lambda i, f: (i, 0)),
            pl.BlockSpec((1, D), lambda i, f: (0, 0)),
            pl.BlockSpec((1, D), lambda i, f: (0, 0)),
            pl.BlockSpec((D, TF), lambda i, f: (0, f)),
            pl.BlockSpec((1, TF), lambda i, f: (0, f)),
            pl.BlockSpec((TF, D), lambda i, f: (f, 0)),
            pl.BlockSpec((1, D), lambda i, f: (0, 0)),
        ],
        out_specs=pl.BlockSpec((TM, D), lambda i, f: (i, 0)),
        scratch_shapes=[pltpu.VMEM((TM, D), jnp.bfloat16),
                        pltpu.VMEM((TM, D), jnp.float32)],
        compiler_params=pltpu.CompilerParams(
            dimension_semantics=("parallel", "arbitrary"),
            vmem_limit_bytes=_VMEM_LIMIT),
    )(x2, p["g"], p["b"], p["w1"], p["b1"].reshape(1, F),
      p["w2"], p["b2"].reshape(1, D))
    return y[:M].reshape(B, L, D)


# ----------------------------- flash-style attention (heads split in-kernel, lane-dense out) -----------------------------

def _attention_kernel(lens_ref, q_ref, k_ref, v_ref, o_ref, m_sc, l_sc, acc_sc,
                      *, heads, dk, tq, tk, causal, n_k):
    b = pl.program_id(0)
    qi = pl.program_id(1)
    ki = pl.program_id(2)

    @pl.when(ki == 0)
    def _():
        m_sc[...] = jnp.full_like(m_sc, -1e30)
        l_sc[...] = jnp.zeros_like(l_sc)
        acc_sc[...] = jnp.zeros_like(acc_sc)

    # rebuild the mask in-kernel from the per-batch key length (no (B,Lq,Lk) HBM mask)
    kv_len = lens_ref[b]
    key_idx = ki * tk + jax.lax.broadcasted_iota(jnp.int32, (tq, tk), 1)
    mask = key_idx >= kv_len
    if causal:
        q_idx = qi * tq + jax.lax.broadcasted_iota(jnp.int32, (tq, tk), 0)
        mask = mask | (key_idx > q_idx)

    q = q_ref[0]          # (tq, D) bf16; 1/sqrt(dk) already folded into the Q weights
    k = k_ref[0]          # (tk, D) bf16
    v = v_ref[0]          # (tk, D) bf16

    for h in range(heads):
        lo = h * dk
        s = jax.lax.dot_general(q[:, lo:lo + dk], k[:, lo:lo + dk],
                                dimension_numbers=(((1,), (1,)), ((), ())),
                                preferred_element_type=jnp.float32)      # (tq, tk)
        s = jnp.where(mask, -1e30, s)
        m_prev = m_sc[h]
        m_new = jnp.maximum(m_prev, jnp.max(s, axis=-1, keepdims=True))
        alpha = jnp.exp(m_prev - m_new)
        p = jnp.exp(s - m_new)
        l_sc[h] = alpha * l_sc[h] + jnp.sum(p, axis=-1, keepdims=True)
        acc_sc[:, pl.ds(lo, dk)] = (alpha * acc_sc[:, pl.ds(lo, dk)]
                                    + jnp.dot(p.astype(jnp.bfloat16), v[:, lo:lo + dk],
                                              preferred_element_type=jnp.float32))
        m_sc[h] = m_new

    @pl.when(ki == n_k - 1)
    def _():
        for h in range(heads):
            lo = h * dk
            o_ref[0, :, pl.ds(lo, dk)] = (
                acc_sc[:, pl.ds(lo, dk)]
                * pl.reciprocal(l_sc[h], approx=True)).astype(o_ref.dtype)


def pallas_attention(q, k, v, kv_lens, *, heads, causal):
    """q: (B, Lq, D) bf16, k/v: (B, Lk, D) bf16, kv_lens: (B,) int -> (B, Lq, D) bf16.

    Pad / causal masks are built in-kernel from kv_lens (scalar-prefetched to SMEM);
    fully-masked (padding) query rows get a uniform softmax -> garbage rows that are
    excluded from the loss downstream (same behavior as the reference).
    """
    B, Lq, D = q.shape
    Lk = k.shape[1]
    dk = D // heads
    TQ = 128 if Lq >= 128 else _round_up(Lq, 8)
    TK = 128 if Lk >= 128 else _round_up(Lk, 8)
    Lqp = _round_up(Lq, TQ)
    Lkp = _round_up(Lk, TK)
    if Lqp != Lq:
        q = jnp.pad(q, ((0, 0), (0, Lqp - Lq), (0, 0)))
    if Lkp != Lk:
        k = jnp.pad(k, ((0, 0), (0, Lkp - Lk), (0, 0)))
        v = jnp.pad(v, ((0, 0), (0, Lkp - Lk), (0, 0)))
    n_k = Lkp // TK

    # TODO(synk): for causal attention, k-tiles strictly above the diagonal could be
    #             skipped entirely (halves work at long L); kept dense for simplicity.
    kernel = functools.partial(_attention_kernel, heads=heads, dk=dk,
                               tq=TQ, tk=TK, causal=causal, n_k=n_k)
    out = pl.pallas_call(
        kernel,
        out_shape=jax.ShapeDtypeStruct((B, Lqp, D), jnp.bfloat16),
        grid_spec=pltpu.PrefetchScalarGridSpec(
            num_scalar_prefetch=1,
            grid=(B, Lqp // TQ, n_k),
            in_specs=[
                pl.BlockSpec((1, TQ, D), lambda b, qi, ki, lens: (b, qi, 0)),
                pl.BlockSpec((1, TK, D), lambda b, qi, ki, lens: (b, ki, 0)),
                pl.BlockSpec((1, TK, D), lambda b, qi, ki, lens: (b, ki, 0)),
            ],
            out_specs=pl.BlockSpec((1, TQ, D), lambda b, qi, ki, lens: (b, qi, 0)),
            scratch_shapes=[
                pltpu.VMEM((heads, TQ, 1), jnp.float32),   # running max
                pltpu.VMEM((heads, TQ, 1), jnp.float32),   # running sum-exp
                pltpu.VMEM((TQ, D), jnp.float32),          # lane-dense accumulator
            ]),
        compiler_params=pltpu.CompilerParams(
            dimension_semantics=("parallel", "parallel", "arbitrary"),
            vmem_limit_bytes=_VMEM_LIMIT),
    )(kv_lens.astype(jnp.int32), q, k, v)
    return out[:, :Lq, :]


# ----------------------------- fused output head: projection + NLL + argmax-correct -----------------------------

def _output_head_kernel(x_ref, w_ref, b_ref, t_ref, nll_ref, corr_ref,
                        m_sc, l_sc, tgt_sc, bv_sc, bi_sc, *, n_v, tn, vocab):
    vi = pl.program_id(1)

    @pl.when(vi == 0)
    def _():
        m_sc[...] = jnp.full_like(m_sc, -1e30)
        l_sc[...] = jnp.zeros_like(l_sc)
        tgt_sc[...] = jnp.zeros_like(tgt_sc)
        bv_sc[...] = jnp.full_like(bv_sc, -1e30)
        bi_sc[...] = jnp.zeros_like(bi_sc)

    logits = (jnp.dot(x_ref[...], w_ref[...],
                      preferred_element_type=jnp.float32) + b_ref[...])   # (TM, TN)
    col = jax.lax.broadcasted_iota(jnp.int32, logits.shape, 1) + vi * tn
    logits = jnp.where(col < vocab, logits, -1e30)                        # mask padded vocab cols
    t = t_ref[...]                                                        # (TM, 1) int32

    # target logit (exactly one tile contains it)
    tgt_sc[...] += jnp.sum(jnp.where(col == t, logits, 0.0), axis=-1, keepdims=True)

    # online logsumexp across vocab tiles
    tile_max = jnp.max(logits, axis=-1, keepdims=True)
    new_m = jnp.maximum(m_sc[...], tile_max)
    l_sc[...] = (l_sc[...] * jnp.exp(m_sc[...] - new_m)
                 + jnp.sum(jnp.exp(logits - new_m), axis=-1, keepdims=True))
    m_sc[...] = new_m

    # running argmax (first-occurrence tie-break); indices tracked in f32 (vocab < 2^24)
    colf = col.astype(jnp.float32)
    tile_idx = jnp.min(jnp.where(logits >= tile_max, colf, 3e9),
                       axis=-1, keepdims=True)
    better = tile_max > bv_sc[...]
    bi_sc[...] = jnp.where(better, tile_idx, bi_sc[...])
    bv_sc[...] = jnp.where(better, tile_max, bv_sc[...])

    @pl.when(vi == n_v - 1)
    def _():
        nll_ref[...] = m_sc[...] + jnp.log(l_sc[...]) - tgt_sc[...]
        corr_ref[...] = (bi_sc[...] == t.astype(jnp.float32)).astype(jnp.float32)


def pallas_output_head(x, w, b, targets):
    """x: (M, D) bf16, w: (D, V) bf16, b: (V,) f32, targets: (M,) int -> (nll, correct) f32.
    Logits never hit HBM: the vocab reduction runs as the innermost ('arbitrary') grid axis."""
    M, D = x.shape
    V = w.shape[1]
    assert V < (1 << 24)  # f32 argmax index tracking is exact below 2^24
    TM = _tile_rows(M)
    Mp = _round_up(M, TM)
    if V >= 128:
        TN = 512 if V >= 512 else (256 if V >= 256 else 128)
        Vp = _round_up(V, TN)
    else:
        TN, Vp = V, V
    n_v = Vp // TN

    xp = jnp.pad(x, ((0, Mp - M), (0, 0))) if Mp != M else x
    wp = jnp.pad(w, ((0, 0), (0, Vp - V))) if Vp != V else w
    bp = b.reshape(1, V)
    if Vp != V:
        bp = jnp.pad(bp, ((0, 0), (0, Vp - V)))
    tp = targets.reshape(M, 1).astype(jnp.int32)
    if Mp != M:
        tp = jnp.pad(tp, ((0, Mp - M), (0, 0)))

    kernel = functools.partial(_output_head_kernel, n_v=n_v, tn=TN, vocab=V)
    nll, corr = pl.pallas_call(
        kernel,
        out_shape=(jax.ShapeDtypeStruct((Mp, 1), jnp.float32),
                   jax.ShapeDtypeStruct((Mp, 1), jnp.float32)),
        grid=(Mp // TM, n_v),
        in_specs=[
            pl.BlockSpec((TM, D), lambda i, v: (i, 0)),
            pl.BlockSpec((D, TN), lambda i, v: (0, v)),
            pl.BlockSpec((1, TN), lambda i, v: (0, v)),
            pl.BlockSpec((TM, 1), lambda i, v: (i, 0)),
        ],
        out_specs=(pl.BlockSpec((TM, 1), lambda i, v: (i, 0)),
                   pl.BlockSpec((TM, 1), lambda i, v: (i, 0))),
        scratch_shapes=[pltpu.VMEM((TM, 1), jnp.float32) for _ in range(5)],
        compiler_params=pltpu.CompilerParams(
            dimension_semantics=("parallel", "arbitrary"),
            vmem_limit_bytes=_VMEM_LIMIT),
    )(xp, wp, bp, tp)
    return nll[:M, 0], corr[:M, 0]


# ----------------------------- model pieces -----------------------------

def positional_encoding(max_len, dim):
    position = jnp.arange(max_len, dtype=jnp.float32)[:, None]
    div_term = jnp.exp(
        jnp.arange(0, dim, 2, dtype=jnp.float32) * -(math.log(10000.0) / dim))
    pe = jnp.zeros((max_len, dim), dtype=jnp.float32)
    pe = pe.at[:, 0::2].set(jnp.sin(position * div_term))
    pe = pe.at[:, 1::2].set(jnp.cos(position * div_term))
    return pe


def embed(ids, table, pe, d_model):
    # TODO(synk): embedding gather kept in plain JAX (data-dependent gather).
    e = jnp.take(table, ids, axis=0)                    # (B, L, D) f32
    L = ids.shape[1]
    return (e * math.sqrt(d_model) + pe[None, :L, :]).astype(jnp.bfloat16)


def init_params(key, vocab_size, d_model, heads, d_ff, num_layers, pad_idx, max_len=64):
    keys = iter(jax.random.split(key, 256))
    dk = d_model // heads
    scale = 1.0 / math.sqrt(dk)   # folded into the Q projection (saves per-score VPU mul)

    def dense(d_in, d_out):
        w = 0.02 * jax.random.normal(next(keys), (d_in, d_out), dtype=jnp.float32)
        b = jnp.zeros((d_out,), dtype=jnp.float32)
        return w, b

    def ln_params():
        return (jnp.ones((1, d_model), jnp.float32),
                jnp.zeros((1, d_model), jnp.float32))

    def self_attn_params():
        wq, bq = dense(d_model, d_model)
        wk, bk = dense(d_model, d_model)
        wv, bv = dense(d_model, d_model)
        wo, bo = dense(d_model, d_model)
        return dict(
            w_qkv=jnp.concatenate([wq * scale, wk, wv], axis=1).astype(jnp.bfloat16),
            b_qkv=jnp.concatenate([bq * scale, bk, bv], axis=0),
            wo=wo.astype(jnp.bfloat16), bo=bo)

    def ctx_attn_params():
        wq, bq = dense(d_model, d_model)
        wk, bk = dense(d_model, d_model)
        wv, bv = dense(d_model, d_model)
        wo, bo = dense(d_model, d_model)
        return dict(
            wq=(wq * scale).astype(jnp.bfloat16), bq=bq * scale,
            w_kv=jnp.concatenate([wk, wv], axis=1).astype(jnp.bfloat16),
            b_kv=jnp.concatenate([bk, bv], axis=0),
            wo=wo.astype(jnp.bfloat16), bo=bo)

    def ffn_params():
        w1, b1 = dense(d_model, d_ff)
        w2, b2 = dense(d_ff, d_model)
        g, be = ln_params()
        return dict(g=g, b=be, w1=w1.astype(jnp.bfloat16), b1=b1,
                    w2=w2.astype(jnp.bfloat16), b2=b2)

    emb = 0.02 * jax.random.normal(next(keys), (vocab_size, d_model), dtype=jnp.float32)
    emb = emb.at[pad_idx].set(0.0)                      # padding_idx -> zero row

    enc_layers = [dict(ln=ln_params(), attn=self_attn_params(), ffn=ffn_params())
                  for _ in range(num_layers)]
    dec_layers = [dict(ln1=ln_params(), self_attn=self_attn_params(),
                       ln2=ln_params(), ctx_attn=ctx_attn_params(), ffn=ffn_params())
                  for _ in range(num_layers)]
    out_w, out_b = dense(d_model, vocab_size)

    return dict(
        embedding=emb,                                   # shared enc/dec (share_embeddings)
        pe=positional_encoding(max_len, d_model),
        enc_layers=enc_layers,
        enc_final_ln=ln_params(),
        dec_layers=dec_layers,
        dec_final_ln=ln_params(),
        out_w=out_w.astype(jnp.bfloat16), out_b=out_b,
    )


def seq2seq_forward(params, src_ids, src_lengths, tgt_ids, *, pad_idx, sos_idx,
                    d_model, heads):
    B, S = src_ids.shape
    _, T = tgt_ids.shape
    pe = params["pe"]
    src_len = src_lengths.astype(jnp.int32)

    # -------- encoder --------
    x = embed(src_ids, params["embedding"], pe, d_model)                  # (B, S, D) bf16
    for lyr in params["enc_layers"]:
        a = lyr["attn"]
        qkv = pallas_ln_linear(x.reshape(B * S, d_model), *lyr["ln"],
                               a["w_qkv"], a["b_qkv"])                    # fused LN + QKV
        # TODO(synk): when d_model % 128 == 0 these column slices can be replaced by
        #             column-block indices into the fused qkv array (no extra HBM copy).
        q = qkv[:, :d_model].reshape(B, S, d_model)
        k = qkv[:, d_model:2 * d_model].reshape(B, S, d_model)
        v = qkv[:, 2 * d_model:].reshape(B, S, d_model)
        ctx = pallas_attention(q, k, v, src_len, heads=heads, causal=False)
        attn_out = pallas_linear(ctx.reshape(B * S, d_model),
                                 a["wo"], a["bo"]).reshape(B, S, d_model)
        x = attn_out + x
        x = ffn_block(x, lyr["ffn"])
    memory = pallas_layer_norm(x, *params["enc_final_ln"])                # (B, S, D)
    mem2d = memory.reshape(B * S, d_model)

    # -------- decoder --------
    dec_in = jnp.concatenate(
        [jnp.full((B, 1), sos_idx, dtype=tgt_ids.dtype), tgt_ids[:, :-1]], axis=1)
    y = embed(dec_in, params["embedding"], pe, d_model)
    dec_len = jnp.sum((dec_in != pad_idx).astype(jnp.int32), axis=1)      # right-padded tgt
    for lyr in params["dec_layers"]:
        sa = lyr["self_attn"]
        ca = lyr["ctx_attn"]
        qkv = pallas_ln_linear(y.reshape(B * T, d_model), *lyr["ln1"],
                               sa["w_qkv"], sa["b_qkv"])
        q = qkv[:, :d_model].reshape(B, T, d_model)
        k = qkv[:, d_model:2 * d_model].reshape(B, T, d_model)
        v = qkv[:, 2 * d_model:].reshape(B, T, d_model)
        ctx = pallas_attention(q, k, v, dec_len, heads=heads, causal=True)
        self_out = pallas_linear(ctx.reshape(B * T, d_model),
                                 sa["wo"], sa["bo"]).reshape(B, T, d_model)
        qres = self_out + y
        qproj = pallas_ln_linear(qres.reshape(B * T, d_model), *lyr["ln2"],
                                 ca["wq"], ca["bq"])                      # fused LN + Q
        kv = pallas_linear(mem2d, ca["w_kv"], ca["b_kv"])                 # fused K/V proj
        kk = kv[:, :d_model].reshape(B, S, d_model)
        vv = kv[:, d_model:].reshape(B, S, d_model)
        mid = pallas_attention(qproj.reshape(B, T, d_model), kk, vv, src_len,
                               heads=heads, causal=False)
        mid_out = pallas_linear(mid.reshape(B * T, d_model),
                                ca["wo"], ca["bo"]).reshape(B, T, d_model)
        y = ffn_block(mid_out + qres, lyr["ffn"])
    y = pallas_layer_norm(y, *params["dec_final_ln"])

    # -------- fused output projection + NLL + argmax-correct --------
    tgt_flat = tgt_ids.reshape(B * T)
    nll, correct = pallas_output_head(y.reshape(B * T, d_model),
                                      params["out_w"], params["out_b"], tgt_flat)
    mask = (tgt_flat != pad_idx).astype(jnp.float32)
    denom = jnp.sum(mask)
    loss = jnp.sum(nll * mask) / denom
    acc = jnp.sum(correct * mask) / denom
    return loss, acc


# ----------------------------- main -----------------------------

if __name__ == "__main__":
    key = jax.random.PRNGKey(0)

    # vocab (size 16, multiple of 8 as the amp path requires)
    vocab = {"_PAD": 0, "_SOS": 1, "_EOS": 2, "_UNK": 3}
    for i in range(12):
        vocab[f"tok{i}"] = 4 + i
    vocab_size = len(vocab)

    # args (small): embed_size == decoder_hidden_size == 32, 4 heads, d_ff 64, 2 layers
    d_model, heads, d_ff, num_layers = 32, 4, 64, 2
    B, S, T = 2, 8, 8

    kp, ks, kt = jax.random.split(key, 3)
    params = init_params(kp, vocab_size, d_model, heads, d_ff, num_layers,
                         pad_idx=vocab["_PAD"])

    src = jax.random.randint(ks, (B, S), 4, vocab_size, dtype=jnp.int32)
    src_lengths = jnp.array([S, 5], dtype=jnp.int32)
    src = jnp.where(jnp.arange(S)[None, :] < src_lengths[:, None], src, vocab["_PAD"])

    tgt = jax.random.randint(kt, (B, T), 4, vocab_size, dtype=jnp.int32)
    tgt_lengths = jnp.array([T, 6], dtype=jnp.int32)
    tgt = jnp.where(jnp.arange(T)[None, :] < tgt_lengths[:, None], tgt, vocab["_PAD"])

    loss, acc = seq2seq_forward(
        params, src, src_lengths, tgt,
        pad_idx=vocab["_PAD"], sos_idx=vocab["_SOS"],
        d_model=d_model, heads=heads,
    )
    jax.block_until_ready((loss, acc))
    assert bool(jnp.isfinite(loss)) and bool(jnp.isfinite(acc))
    print("KERNEL_OK")
</pallas_src>

<mosaic_0001>
module attributes {stable_mosaic.version = 11 : i64} {
  func.func @_ln_matmul_kernel(%arg0: i32, %arg1: i32, %arg2: memref<16x32xbf16, #tpu.memory_space<vmem>>, %arg3: memref<1x32xf32, #tpu.memory_space<vmem>>, %arg4: memref<1x32xf32, #tpu.memory_space<vmem>>, %arg5: memref<32x96xbf16, #tpu.memory_space<vmem>>, %arg6: memref<1x96xf32, #tpu.memory_space<vmem>>, %arg7: memref<16x96xbf16, #tpu.memory_space<vmem>>, %arg8: memref<16x32xbf16, #tpu.memory_space<vmem>>) attributes {dimension_semantics = [#tpu.dimension_semantics<parallel>, #tpu.dimension_semantics<arbitrary>], iteration_bounds = array<i64: 1, 1>, scalar_prefetch = 0 : i64, scratch_operands = 1 : i64, tpu.core_type = #tpu.core_type<tc>, window_params = [{transform_indices = @transform_0, window_bounds = array<i64: 16, 32>}, {pipeline_mode = #tpu.pipeline_mode<synchronous>, transform_indices = @transform_1, window_bounds = array<i64: 1, 32>}, {pipeline_mode = #tpu.pipeline_mode<synchronous>, transform_indices = @transform_2, window_bounds = array<i64: 1, 32>}, {transform_indices = @transform_3, window_bounds = array<i64: 32, 96>}, {transform_indices = @transform_4, window_bounds = array<i64: 1, 96>}, {transform_indices = @transform_5, window_bounds = array<i64: 16, 96>}]} {
    %c0_i32 = arith.constant 0 : i32
    %0 = arith.cmpi eq, %arg1, %c0_i32 : i32
    %1 = arith.extui %0 : i1 to i32
    %c0_i32_0 = arith.constant 0 : i32
    %2 = arith.cmpi ne, %1, %c0_i32_0 : i32
    scf.if %2 {
      %c0_8 = arith.constant 0 : index
      %c0_9 = arith.constant 0 : index
      %11 = vector.load %arg2[%c0_8, %c0_9] : memref<16x32xbf16, #tpu.memory_space<vmem>>, vector<16x32xbf16>
      %12 = arith.extf %11 : vector<16x32xbf16> to vector<16x32xf32>
      %cst_10 = arith.constant dense<0.000000e+00> : vector<16xf32>
      %13 = vector.multi_reduction <add>, %12, %cst_10 [1] : vector<16x32xf32> to vector<16xf32>
      %14 = vector.shape_cast %13 : vector<16xf32> to vector<16x1xf32>
      %cst_11 = arith.constant 3.200000e+01 : f32
      %15 = vector.broadcast %cst_11 : f32 to vector<16x1xf32>
      %16 = arith.divf %14, %15 : vector<16x1xf32>
      %17 = vector.broadcast %16 : vector<16x1xf32> to vector<16x32xf32>
      %18 = arith.subf %12, %17 : vector<16x32xf32>
      %19 = arith.mulf %18, %18 : vector<16x32xf32>
      %cst_12 = arith.constant dense<0.000000e+00> : vector<16xf32>
      %20 = vector.multi_reduction <add>, %19, %cst_12 [1] : vector<16x32xf32> to vector<16xf32>
      %21 = vector.shape_cast %20 : vector<16xf32> to vector<16x1xf32>
      %cst_13 = arith.constant 3.200000e+01 : f32
      %22 = vector.broadcast %cst_13 : f32 to vector<16x1xf32>
      %23 = arith.divf %21, %22 : vector<16x1xf32>
      %24 = vector.broadcast %16 : vector<16x1xf32> to vector<16x32xf32>
      %25 = arith.subf %12, %24 : vector<16x32xf32>
      %cst_14 = arith.constant 9.99999997E-7 : f32
      %26 = vector.broadcast %cst_14 : f32 to vector<16x1xf32>
      %27 = arith.addf %23, %26 : vector<16x1xf32>
      %28 = math.rsqrt %27 : vector<16x1xf32>
      %29 = vector.broadcast %28 : vector<16x1xf32> to vector<16x32xf32>
      %30 = arith.mulf %25, %29 : vector<16x32xf32>
      %c0_15 = arith.constant 0 : index
      %c0_16 = arith.constant 0 : index
      %31 = vector.load %arg3[%c0_15, %c0_16] : memref<1x32xf32, #tpu.memory_space<vmem>>, vector<1x32xf32>
      %32 = vector.broadcast %31 : vector<1x32xf32> to vector<16x32xf32>
      %33 = arith.mulf %30, %32 : vector<16x32xf32>
      %c0_17 = arith.constant 0 : index
      %c0_18 = arith.constant 0 : index
      %34 = vector.load %arg4[%c0_17, %c0_18] : memref<1x32xf32, #tpu.memory_space<vmem>>, vector<1x32xf32>
      %35 = vector.broadcast %34 : vector<1x32xf32> to vector<16x32xf32>
      %36 = arith.addf %33, %35 : vector<16x32xf32>
      %37 = arith.truncf %36 : vector<16x32xf32> to vector<16x32xbf16>
      %c0_19 = arith.constant 0 : index
      %c0_20 = arith.constant 0 : index
      %38 = vector.load %arg8[%c0_19, %c0_20] : memref<16x32xbf16, #tpu.memory_space<vmem>>, vector<16x32xbf16>
      tpu.vector_store %arg8[%c0_19, %c0_20], %37 {strides = array<i32>} : memref<16x32xbf16, #tpu.memory_space<vmem>>, vector<16x32xbf16>,
    } else {
    }
    %c0 = arith.constant 0 : index
    %c0_1 = arith.constant 0 : index
    %3 = vector.load %arg8[%c0, %c0_1] : memref<16x32xbf16, #tpu.memory_space<vmem>>, vector<16x32xbf16>
    %c0_2 = arith.constant 0 : index
    %c0_3 = arith.constant 0 : index
    %4 = vector.load %arg5[%c0_2, %c0_3] : memref<32x96xbf16, #tpu.memory_space<vmem>>, vector<32x96xbf16>
    %cst = arith.constant dense<0.000000e+00> : vector<16x96xf32>
    %5 = tpu.matmul %3, %4, %cst {dimension_numbers = #tpu.dot_dimension_numbers<[1], [0], [0], [1], [0, 0, 1, 1], [], []>} : vector<16x32xbf16>, vector<32x96xbf16>, vector<16x96xf32> -> vector<16x96xf32>
    %c0_4 = arith.constant 0 : index
    %c0_5 = arith.constant 0 : index
    %6 = vector.load %arg6[%c0_4, %c0_5] : memref<1x96xf32, #tpu.memory_space<vmem>>, vector<1x96xf32>
    %7 = vector.broadcast %6 : vector<1x96xf32> to vector<16x96xf32>
    %8 = arith.addf %5, %7 : vector<16x96xf32>
    %9 = arith.truncf %8 : vector<16x96xf32> to vector<16x96xbf16>
    %c0_6 = arith.constant 0 : index
    %c0_7 = arith.constant 0 : index
    %10 = vector.load %arg7[%c0_6, %c0_7] : memref<16x96xbf16, #tpu.memory_space<vmem>>, vector<16x96xbf16>
    tpu.vector_store %arg7[%c0_6, %c0_7], %9 {strides = array<i32>} : memref<16x96xbf16, #tpu.memory_space<vmem>>, vector<16x96xbf16>,
    return
  }
  func.func @transform_0(%arg0: i32, %arg1: i32) -> (i32, i32) {
    %c0_i32 = arith.constant 0 : i32
    %c0_i32_0 = arith.constant 0 : i32
    return %arg0, %c0_i32 : i32, i32
  }
  func.func @transform_1(%arg0: i32, %arg1: i32) -> (i32, i32) {
    %c0_i32 = arith.constant 0 : i32
    %c0_i32_0 = arith.constant 0 : i32
    %c0_i32_1 = arith.constant 0 : i32
    return %c0_i32, %c0_i32_0 : i32, i32
  }
  func.func @transform_2(%arg0: i32, %arg1: i32) -> (i32, i32) {
    %c0_i32 = arith.constant 0 : i32
    %c0_i32_0 = arith.constant 0 : i32
    %c0_i32_1 = arith.constant 0 : i32
    return %c0_i32, %c0_i32_0 : i32, i32
  }
  func.func @transform_3(%arg0: i32, %arg1: i32) -> (i32, i32) {
    %c0_i32 = arith.constant 0 : i32
    %c0_i32_0 = arith.constant 0 : i32
    return %c0_i32, %arg1 : i32, i32
  }
  func.func @transform_4(%arg0: i32, %arg1: i32) -> (i32, i32) {
    %c0_i32 = arith.constant 0 : i32
    %c0_i32_0 = arith.constant 0 : i32
    return %c0_i32, %arg1 : i32, i32
  }
  func.func @transform_5(%arg0: i32, %arg1: i32) -> (i32, i32) {
    %c0_i32 = arith.constant 0 : i32
    return %arg0, %arg1 : i32, i32
  }
}

</mosaic_0001>

<llo_original>
// kernel: tpu_custom_call.1
$region0: #{tpu_custom_call.1}
  #allocation0 [shape = 'u32[]', space=smem, size = 0x4, offset = 0x4, fixed_abs, tag = 'smem constant byte address 0x4 - core index']
  #allocation1 [shape = 'u32[144,128]{1,0:T(1,128)}', space=vmem, size = 0x12000, scoped, tag = 'internal scratch']
  #allocation2 [shape = 'bf16[16,32]{1,0:T(16,128)(2,1)}', space=vmem, size = 0x1000, scoped, tag = 'scratch operand']
  %s0 = inlined_call_operand.hbm [shape: bf16[16,32], index: 0, kind: input, shape index: {}]
  %s1 = inlined_call_operand.vmem [shape: f32[1,32], index: 1, kind: input, shape index: {}]
  %s2 = inlined_call_operand.vmem [shape: f32[1,32], index: 2, kind: input, shape index: {}]
  %s3 = inlined_call_operand.hbm [shape: bf16[32,96], index: 3, kind: input, shape index: {}]
  %s4 = inlined_call_operand.vmem [shape: f32[1,96], index: 4, kind: input, shape index: {}]
  %s5 = inlined_call_operand.hbm [shape: bf16[16,96], index: 5, kind: output, shape index: {}]
  %s6 = sld [smem:[#allocation0]]
  $region42: #{tpu_custom_call.1} parent=0
    _
  %s8 = ssub.s32 1, %s6
  %s9 = scalar_select 0, %s8, %s6
  $region1: #{tpu_custom_call.1} parent=0
    #allocation3 [shape = 'u8[4096]{0}', space=vmem, size = 0x1000, scoped, tag = 'input window, operand 0, single buffered']
    #allocation4 [shape = 's32[1]{0}', space=sflag, size = 0x4, scoped, tag = 'scoped memory for tpu_custom_call.1']
    #allocation5 [shape = 's32[1]{0}', space=sflag, size = 0x4, scoped, tag = 'scoped memory for tpu_custom_call.1']
    #allocation6 [shape = 'u8[8192]{0}', space=vmem, size = 0x2000, scoped, tag = 'input window, operand 3, single buffered']
    #allocation7 [shape = 's32[1]{0}', space=sflag, size = 0x4, scoped, tag = 'scoped memory for tpu_custom_call.1']
    #allocation8 [shape = 'u8[4096]{0}', space=vmem, size = 0x1000, scoped, tag = 'output window, operand 0, single buffered']
    %10 = vsyncpa [#allocation4], 0
    %11 = vsyncpa [#allocation7], 0
    %12 = vsyncpa [#allocation5], 0
    // Predicated region
    $region2: #{tpu_custom_call.1} parent=1 // pred_check
      _
    $region3: #{tpu_custom_call.1} parent=1 // pred_check_branch
      %14 = sbr.rel (0) target = $region5
    $region4: #{tpu_custom_call.1} parent=1 // pred_region
      %s16 = ssub.s32 128, 128
      %17 = vsyncadd [#allocation4], %s16
      %s18 = sshll.u32 [#allocation3], 4
      %s19 = int_to_ptr.vmem [resolvable:$true] %s18
      %24 = dma.hbm_to_vmem [thread:$0]  %s0, 128, %s19, [#allocation4], 64, 64, 4
    $region5: #{tpu_custom_call.1} parent=1 // pred_fallthru
      _
    // Predicated region
    $region6: #{tpu_custom_call.1} parent=1 // pred_check
      _
    $region7: #{tpu_custom_call.1} parent=1 // pred_check_branch
      %26 = sbr.rel (0) target = $region9
    $region8: #{tpu_custom_call.1} parent=1 // pred_region
      _
    $region9: #{tpu_custom_call.1} parent=1 // pred_fallthru
      _
    // Predicated region
    $region10: #{tpu_custom_call.1} parent=1 // pred_check
      _
    $region11: #{tpu_custom_call.1} parent=1 // pred_check_branch
      %28 = sbr.rel (0) target = $region13
    $region12: #{tpu_custom_call.1} parent=1 // pred_region
      _
    $region13: #{tpu_custom_call.1} parent=1 // pred_fallthru
      _
    // Predicated region
    $region14: #{tpu_custom_call.1} parent=1 // pred_check
      _
    $region15: #{tpu_custom_call.1} parent=1 // pred_check_branch
      %30 = sbr.rel (0) target = $region17
    $region16: #{tpu_custom_call.1} parent=1 // pred_region
      %s32 = ssub.s32 256, 256
      %33 = vsyncadd [#allocation7], %s32
      %s34 = sshll.u32 [#allocation6], 4
      %s35 = int_to_ptr.vmem [resolvable:$true] %s34
      %40 = dma.hbm_to_vmem [thread:$0]  %s3, 256, %s35, [#allocation7], 64, 64, 4
    $region17: #{tpu_custom_call.1} parent=1 // pred_fallthru
      _
    // Predicated region
    $region18: #{tpu_custom_call.1} parent=1 // pred_check
      _
    $region19: #{tpu_custom_call.1} parent=1 // pred_check_branch
      %42 = sbr.rel (0) target = $region21
    $region20: #{tpu_custom_call.1} parent=1 // pred_region
      _
    $region21: #{tpu_custom_call.1} parent=1 // pred_fallthru
      _
    // Predicated region
    $region22: #{tpu_custom_call.1} parent=1 // pred_check
      _
    $region23: #{tpu_custom_call.1} parent=1 // pred_check_branch
      %44 = sbr.rel (0) target = $region25
    $region24: #{tpu_custom_call.1} parent=1 // pred_region
      %45 = dma.done [#allocation4], 128
    $region25: #{tpu_custom_call.1} parent=1 // pred_fallthru
      _
    // Predicated region
    $region26: #{tpu_custom_call.1} parent=1 // pred_check
      _
    $region27: #{tpu_custom_call.1} parent=1 // pred_check_branch
      %47 = sbr.rel (0) target = $region29
    $region28: #{tpu_custom_call.1} parent=1 // pred_region
      %48 = dma.done [#allocation7], 256
    $region29: #{tpu_custom_call.1} parent=1 // pred_fallthru
      _
    %p50 = scmp.eq.s32.totalorder 0, 0
    // Predicated region
    $region30: #{tpu_custom_call.1} parent=1 // pred_check
      %p51 = pneg %p50
    $region31: #{tpu_custom_call.1} parent=1 // pred_check_branch
      %53 = sbr.rel (%p51) target = $region33
    $region32: #{tpu_custom_call.1} parent=1 // pred_region
      %v54 = vld [vmem:[#allocation3] sm:$0xf]
      %v55 = vld [vmem:[#allocation3 + $0x4] sm:$0xf]
      %v56 = vunpack.c.l.bf16 %v54
      %v57 = vunpack.c.l.bf16 %v55
      %vm58 = vcmask 261120
      %v59 = vsel %vm58, %v56, 0.0
      %60 = vadd.xlane.f32.xlu0 %v59
      %v61 = vpop.xlane.xlu0 %60
      %v62 = vsel %vm58, %v57, 0.0
      %63 = vadd.xlane.f32.xlu0 %v62
      %v64 = vpop.xlane.xlu0 %63
      %v65 = vrcp.pop 32.0
      %v66 = vmul.f32 %v61, %v65
      %v67 = vmul.f32 %v64, %v65
      %v68 = vsub.f32 %v56, %v66
      %v69 = vsub.f32 %v57, %v67
      %v70 = vmul.f32 %v68, %v68
      %v71 = vmul.f32 %v69, %v69
      %v72 = vsel %vm58, %v70, 0.0
      %73 = vadd.xlane.f32.xlu0 %v72
      %v74 = vpop.xlane.xlu0 %73
      %v75 = vsel %vm58, %v71, 0.0
      %76 = vadd.xlane.f32.xlu0 %v75
      %v77 = vpop.xlane.xlu0 %76
      %v78 = vmul.f32 %v74, %v65
      %v79 = vmul.f32 %v77, %v65
      %v80 = vadd.f32 %v78, 1e-06
      %v81 = vadd.f32 %v79, 1e-06
      %v82 = vrsqrt.pop %v80
      %v83 = vrsqrt.pop %v81
      %v84 = vmul.f32 %v68, %v82
      %v85 = vmul.f32 %v69, %v83
      %v86 = vld [vmem:[%s1] sm:$0x1]
      %v88 = vlaneseq
      %v89 = vshrl.u32 %v88, 7
      %v90 = vsub.s32 0, %v89
      %v91 = vrot.slane %v86, %v90
      %v93 = vmul.f32 %v84, %v91
      %v94 = vmul.f32 %v85, %v91
      %v95 = vld [vmem:[%s2] sm:$0x1]
      %v97 = vlaneseq
      %v98 = vshrl.u32 %v97, 7
      %v99 = vsub.s32 0, %v98
      %v100 = vrot.slane %v95, %v99
      %v102 = vadd.f32 %v93, %v100
      %v103 = vadd.f32 %v94, %v100
      %v104 = vpack.c.bf16 %v103, %v102
      %105 = vst.msk [vmem:[#allocation2] sm:$0xff] %vm58, %v104
    $region33: #{tpu_custom_call.1} parent=1 // pred_fallthru
      _
    %v106 = vld [vmem:[#allocation2] sm:$0xff]
    %v107 = vld [vmem:[#allocation6] sm:$0xf]
    %v108 = vld [vmem:[#allocation6 + $0x4] sm:$0xf]
    %v109 = vld [vmem:[#allocation6 + $0x8] sm:$0xf]
    %v110 = vld [vmem:[#allocation6 + $0xc] sm:$0xf]
    %v111 = vld [vmem:[%s4] sm:$0x1]
    %v113 = vlaneseq
    %v114 = vshrl.u32 %v113, 7
    %v115 = vsub.s32 0, %v114
    %v116 = vrot.slane %v111, %v115
    %v122 = vunpack.c.l.b16 %v107
    %v123 = vunpack.c.l.b16 %v108
    %v124 = vunpack.c.l.b16 %v109
    %v125 = vunpack.c.l.b16 %v110
    %v126 = vpack.c.b16 %v123, %v122
    %v127 = vpack.c.b16 %v125, %v124
    %vm130 = vcmask 261120
    %v132 = vsel %vm130, %v106, 0
    %134 = vmatprep.subr.bf16.mxu0 0
    %135 = vmatpush1.bf16.msra.mxu0 %v126
    %136 = vmatprep.subr.bf16.mxu0 0
    %137 = vmatpush1.bf16.msra.mxu0 %v127
    %138 = vmatprep.subr.bf16.mxu0 0
    %139 = vmatpush1.bf16.msra.mxu0 0
    %140 = vmatprep.subr.bf16.mxu0 0
    %141 = vmatpush1.bf16.msra.mxu0 0
    %142 = vmatprep.subr.bf16.mxu0 0
    %143 = vmatpush1.bf16.msra.mxu0 0
    %144 = vmatprep.subr.bf16.mxu0 0
    %145 = vmatpush1.bf16.msra.mxu0 0
    %146 = vmatprep.subr.bf16.mxu0 0
    %147 = vmatpush1.bf16.msra.mxu0 0
    %148 = vmatprep.subr.bf16.mxu0 0
    %149 = vmatpush1.bf16.msra.mxu0 0
    %150 = vmatprep.subr.bf16.mxu0 0
    %151 = vmatpush1.bf16.msra.mxu0 0
    %152 = vmatprep.subr.bf16.mxu0 0
    %153 = vmatpush1.bf16.msra.mxu0 0
    %154 = vmatprep.subr.bf16.mxu0 0
    %155 = vmatpush1.bf16.msra.mxu0 0
    %156 = vmatprep.subr.bf16.mxu0 0
    %157 = vmatpush1.bf16.msra.mxu0 0
    %158 = vmatprep.subr.bf16.mxu0 0
    %159 = vmatpush1.bf16.msra.mxu0 0
    %160 = vmatprep.subr.bf16.mxu0 0
    %161 = vmatpush1.bf16.msra.mxu0 0
    %162 = vmatprep.subr.bf16.mxu0 0
    %163 = vmatpush1.bf16.msra.mxu0 0
    %164 = vmatprep.subr.bf16.mxu0 0
    %165 = vmatpush1.bf16.msra.mxu0 0
    %166 = vmatprep.mubr.bf16.mxu0 0
    %167 = vmatmul.mubr.bf16.gmra.mrb[0].mxu0 %v132
    %v168 = vpop.f32.mrb[0].mxu0
    %v169 = vadd.f32 %v116, %v168
    %v170 = vpop.f32.mrb[0].mxu0
    %v171 = vpop.f32.mrb[0].mxu0
    %v172 = vadd.f32 %v116, %v171
    %v173 = vpop.f32.mrb[0].mxu0
    %174 = vdwg.mxu0
    %v175 = vpack.c.bf16 %v172, %v169
    %v177 = vunpack.c.l.b16 %v175
    %v178 = vunpack.c.h.b16 %v175
    %v179 = vpack.c.b16 %v177, %v177
    %v180 = vpack.c.b16 %v178, %v178
    %vm183 = vcmask 781312
    %184 = vst.msk [vmem:[#allocation8] sm:$0xf] %vm183, %v179
    %185 = vst.msk [vmem:[#allocation8 + $0x4] sm:$0xf] %vm183, %v180
    // Predicated region
    $region34: #{tpu_custom_call.1} parent=1 // pred_check
      _
    $region35: #{tpu_custom_call.1} parent=1 // pred_check_branch
      %187 = sbr.rel (0) target = $region37
    $region36: #{tpu_custom_call.1} parent=1 // pred_region
      %s189 = ssub.s32 128, 128
      %190 = vsyncadd [#allocation5], %s189
      %s191 = sshll.u32 [#allocation8], 4
      %s192 = int_to_ptr.vmem [resolvable:$true] %s191
      %197 = dma.vmem_to_hbm [thread:$0]  %s192, 128, %s5, [#allocation5], 64, 64, 4
    $region37: #{tpu_custom_call.1} parent=1 // pred_fallthru
      _
    // Predicated region
    $region38: #{tpu_custom_call.1} parent=1 // pred_check
      _
    $region39: #{tpu_custom_call.1} parent=1 // pred_check_branch
      %199 = sbr.rel (0) target = $region41
    $region40: #{tpu_custom_call.1} parent=1 // pred_region
      %200 = dma.done [#allocation5], 128
    $region41: #{tpu_custom_call.1} parent=1 // pred_fallthru
      _
    %201 = vsyncpa [#allocation4], 1
    %202 = vsyncpa [#allocation7], 1
    %203 = vsyncpa [#allocation5], 1

</llo_original>
